<compile_context>
chip_gen: v5e
topology: v5e:2x2
jax: 0.10.0
libtpu: 0.0.40
codegen_flags: <defaults>
</compile_context>

<pallas_src>
import jax
import jax.numpy as jnp
from jax.experimental import pallas as pl
from jax.experimental.pallas import tpu as pltpu

_LANE = 128                     # TPU lane width
_MAX_LANES = 2048               # lane-dense slab width cap
_TARGET_TILE_BYTES = 4 << 20    # ~4 MiB per tile -> 4 bufs (in+out, dbl-buf) = 16 MiB
_VMEM_LIMIT_BYTES = 32 << 20    # raise v5e's 16 MiB default; default on v6e/v7x


def _copy_kernel(x_ref, o_ref):
    # Pure pass-through of the current VMEM tile.
    o_ref[...] = x_ref[...]


def _lane_dense_cols(total):
    """Largest multiple of 128 (<= cap) that divides `total`, so output
    stores are unmasked full-lane vst.  None if total % 128 != 0."""
    for cand in range(_MAX_LANES, 0, -_LANE):
        if total % cand == 0:
            return cand
    return None


def _pick_block_rows(rows, cols, itemsize):
    """Byte-budgeted row tile: multiple of 8, ~_TARGET_TILE_BYTES per tile,
    and at least 2 grid steps (when rows allow) so ("parallel",) can
    load-balance across the two TensorCores on v7x."""
    if rows <= 8:
        return rows  # full extent -> exempt from the (8, .) rule
    bytes_per_row = max(cols * itemsize, 1)
    br = max((_TARGET_TILE_BYTES // bytes_per_row) // 8 * 8, 8)
    # Cap at ~half the rows (rounded up to a multiple of 8) so grid >= 2.
    half = (((rows + 1) // 2) + 7) // 8 * 8
    return min(br, half)


def _pallas_identity_2d(x2d, block_rows):
    rows, cols = x2d.shape
    nbytes = rows * cols * x2d.dtype.itemsize
    grid = (pl.cdiv(rows, block_rows),)
    return pl.pallas_call(
        _copy_kernel,
        out_shape=jax.ShapeDtypeStruct((rows, cols), x2d.dtype),
        grid=grid,
        in_specs=[pl.BlockSpec((block_rows, cols), lambda i: (i, 0))],
        out_specs=pl.BlockSpec((block_rows, cols), lambda i: (i, 0)),
        # Identity copy: alias input buffer to output.  Effective only when
        # the caller donates x (see model_forward_pallas below); harmless
        # (XLA inserts a copy) otherwise.
        input_output_aliases={0: 0},
        # Pure-DMA kernel: tell the XLA scheduler its real cost so it can
        # overlap with neighboring compute instead of serializing.
        cost_estimate=pl.CostEstimate(
            flops=0, transcendentals=0, bytes_accessed=2 * nbytes),
        compiler_params=pltpu.CompilerParams(
            dimension_semantics=("parallel",),
            vmem_limit_bytes=_VMEM_LIMIT_BYTES,
        ),
    )(x2d)


def _pallas_identity(x):
    """Tiled identity copy of `x` through a Pallas TPU kernel."""
    orig_shape = x.shape
    total = x.size
    itemsize = jnp.dtype(x.dtype).itemsize

    cols = _lane_dense_cols(total)
    if cols is None:
        # Oddly sized input (total % 128 != 0): keep the trailing dim as the
        # (exempt) full extent and still tile rows in multiples of 8 so the
        # whole array never has to fit in VMEM at once.
        cols = orig_shape[-1] if x.ndim >= 1 else 1
    rows = total // cols

    x2d = x.reshape(rows, cols)
    block_rows = _pick_block_rows(rows, cols, itemsize)
    out2d = _pallas_identity_2d(x2d, block_rows)
    return out2d.reshape(orig_shape)


# Pallas path: jit with donation so input_output_aliases={0: 0} actually
# elides the second HBM allocation (callers must not reuse x afterwards).
model_forward_pallas = jax.jit(_pallas_identity, donate_argnums=0)


def model_forward(x, use_pallas=False):
    """Stand-in for Model.forward (whose body is `pass` in PyTorch).

    Default path is the no-op `return x` (fastest correct lowering of an
    identity: zero HBM traffic, zero launch overhead).  Set use_pallas=True
    to route through the Pallas identity-copy kernel instead; note that path
    donates x.
    """
    if use_pallas:
        return model_forward_pallas(x)
    return x


if __name__ == "__main__":
    key = jax.random.PRNGKey(0)
    # Small NCHW input consistent with an image-model forward signature.
    x = jax.random.normal(key, (2, 4, 16, 16), dtype=jnp.float32)
    x_host = jax.device_get(x)  # host copy for the correctness check (x is donated)

    # Exercise the Pallas kernel path once.
    y = model_forward(x, use_pallas=True)
    jax.block_until_ready(y)

    assert y.shape == x_host.shape
    assert jnp.allclose(y, jnp.asarray(x_host)), "identity kernel mismatch"
    print("KERNEL_OK")
</pallas_src>

<mosaic_0001>
module attributes {stable_mosaic.version = 11 : i64} {
  func.func @_copy_kernel(%arg0: i32, %arg1: memref<1x2048xf32, #tpu.memory_space<vmem>>, %arg2: memref<1x2048xf32, #tpu.memory_space<vmem>>) attributes {dimension_semantics = [#tpu.dimension_semantics<parallel>], iteration_bounds = array<i64: 1>, scalar_prefetch = 0 : i64, scratch_operands = 0 : i64, tpu.core_type = #tpu.core_type<tc>, window_params = [{transform_indices = @transform_0, window_bounds = array<i64: 1, 2048>}, {transform_indices = @transform_1, window_bounds = array<i64: 1, 2048>}]} {
    %c0 = arith.constant 0 : index
    %c0_0 = arith.constant 0 : index
    %0 = vector.load %arg1[%c0, %c0_0] : memref<1x2048xf32, #tpu.memory_space<vmem>>, vector<1x2048xf32>
    %c0_1 = arith.constant 0 : index
    %c0_2 = arith.constant 0 : index
    %1 = vector.load %arg2[%c0_1, %c0_2] : memref<1x2048xf32, #tpu.memory_space<vmem>>, vector<1x2048xf32>
    tpu.vector_store %arg2[%c0_1, %c0_2], %0 {strides = array<i32>} : memref<1x2048xf32, #tpu.memory_space<vmem>>, vector<1x2048xf32>,
    return
  }
  func.func @transform_0(%arg0: i32) -> (i32, i32) {
    %c0_i32 = arith.constant 0 : i32
    %c0_i32_0 = arith.constant 0 : i32
    return %arg0, %c0_i32 : i32, i32
  }
  func.func @transform_1(%arg0: i32) -> (i32, i32) {
    %c0_i32 = arith.constant 0 : i32
    %c0_i32_0 = arith.constant 0 : i32
    return %arg0, %c0_i32 : i32, i32
  }
}

</mosaic_0001>

<llo_original>
// kernel: _pallas_identity.1
$region0: #{_pallas_identity.1}
  #allocation0 [shape = 'u32[]', space=smem, size = 0x4, offset = 0x4, fixed_abs, tag = 'smem constant byte address 0x4 - core index']
  #allocation1 [shape = 'u32[72,128]{1,0:T(1,128)}', space=vmem, size = 0x9000, scoped, tag = 'internal scratch']
  %s0 = inlined_call_operand.vmem [shape: f32[1,2048], index: 0, kind: input, shape index: {}, may-alias: {0,1}]
  %s1 = inlined_call_operand.vmem [shape: f32[1,2048], index: 1, kind: output, shape index: {}, may-alias: {0,1}]
  %s2 = sld [smem:[#allocation0]]
  $region14: #{_pallas_identity.1} parent=0
    _
  %s4 = ssub.s32 1, %s2
  %s5 = scalar_select 0, %s4, %s2
  // Predicated region
  $region2: #{_pallas_identity.1} parent=0 // pred_check
    _
  $region3: #{_pallas_identity.1} parent=0 // pred_check_branch
    %7 = sbr.rel (0) target = $region5
  $region4: #{_pallas_identity.1} parent=0 // pred_region
    _
  $region5: #{_pallas_identity.1} parent=0 // pred_fallthru
    _
  %v8 = vld [vmem:[%s0] sm:$0xff]
  %v9 = vld [vmem:[%s0 + $0x8] sm:$0xff]
  %10 = vst [vmem:[%s1] sm:$0xff] %v8
  %11 = vst [vmem:[%s1 + $0x8] sm:$0xff] %v9
  // Predicated region
  $region6: #{_pallas_identity.1} parent=0 // pred_check
    _
  $region7: #{_pallas_identity.1} parent=0 // pred_check_branch
    %13 = sbr.rel (0) target = $region9
  $region8: #{_pallas_identity.1} parent=0 // pred_region
    _
  $region9: #{_pallas_identity.1} parent=0 // pred_fallthru
    _
  // Predicated region
  $region10: #{_pallas_identity.1} parent=0 // pred_check
    _
  $region11: #{_pallas_identity.1} parent=0 // pred_check_branch
    %15 = sbr.rel (0) target = $region13
  $region12: #{_pallas_identity.1} parent=0 // pred_region
    _
  $region13: #{_pallas_identity.1} parent=0 // pred_fallthru
    _

</llo_original>
